<compile_context>
chip_gen: v5e
topology: v5e:2x2
jax: 0.10.0
libtpu: 0.0.40
codegen_flags: <defaults>
</compile_context>

<pallas_src>
import functools

import jax
import jax.numpy as jnp
from jax.experimental import pallas as pl
from jax.experimental.pallas import tpu as pltpu

_LANES = 128


def _round_up(x, m):
    return ((x + m - 1) // m) * m


def mlp_kernel(x_ref, w1_ref, b1_ref, w2_ref, b2_ref, o_ref):
    # First Linear: bf16 operands on the MXU, f32 accumulation.
    x = x_ref[...].astype(w1_ref.dtype)
    h = jnp.dot(x, w1_ref[...], preferred_element_type=jnp.float32)
    # Bias add + ReLU in f32 on the VPU; b1 is (1, H) -> sublane-broadcast add.
    h = jnp.maximum(h + b1_ref[...], 0.0)
    # Second Linear into the lane-dense (TB, 128) padded output block.
    o = jnp.dot(h.astype(w2_ref.dtype), w2_ref[...],
                preferred_element_type=jnp.float32)
    o_ref[...] = (o + b2_ref[...]).astype(o_ref.dtype)


@functools.partial(jax.jit, static_argnames=("block_b",))
def net_forward(x, w1, b1, w2, b2, *, block_b=256):
    """y = relu(x @ w1 + b1) @ w2 + b2.

    x : (B, obs) f32
    w1: (obs, H) bf16/f32, b1: (1, H) f32
    w2: (H, A)  bf16/f32, b2: (1, A) f32
    returns (B, A) f32 logits.
    """
    B, obs = x.shape
    H = w1.shape[1]
    A = w2.shape[1]

    # Batch tile: >= 256 rows (multiple of 8) to fill the MXU M dimension, but
    # never larger than the (rounded-up) batch itself.
    TB = min(block_b, _round_up(B, 8))
    B_pad = _round_up(B, TB)

    # Lane-dense output: pad the logits dim (A=2) up to 128 lanes so the output
    # store is a full-lane vst instead of a masked vst.msk.
    A_pad = _round_up(A, _LANES)

    x_p = x if B_pad == B else jnp.pad(x, ((0, B_pad - B), (0, 0)))
    w2_p = jnp.pad(w2, ((0, 0), (0, A_pad - A)))
    b2_p = jnp.pad(b2, ((0, 0), (0, A_pad - A)))

    out = pl.pallas_call(
        mlp_kernel,
        out_shape=jax.ShapeDtypeStruct((B_pad, A_pad), jnp.float32),
        grid_spec=pl.GridSpec(
            grid=(B_pad // TB,),
            in_specs=[
                # batch-tiled activations (double-buffered against compute)
                pl.BlockSpec((TB, obs), lambda i: (i, 0)),
                # weights/biases stay VMEM-resident across the whole grid
                pl.BlockSpec((obs, H), lambda i: (0, 0)),
                pl.BlockSpec((1, H), lambda i: (0, 0)),
                pl.BlockSpec((H, A_pad), lambda i: (0, 0)),
                pl.BlockSpec((1, A_pad), lambda i: (0, 0)),
            ],
            out_specs=pl.BlockSpec((TB, A_pad), lambda i: (i, 0)),
        ),
        compiler_params=pltpu.CompilerParams(
            # Batch steps are independent -> shard across both TCs on v7x.
            dimension_semantics=("parallel",),
        ),
    )(x_p, w1, b1, w2_p, b2_p)

    # Slice away batch padding and the zero-padded logit lanes before any
    # softmax/argmax so padded columns never leak into action selection.
    return out[:B, :A]


def net_reference(x, w1, b1, w2, b2):
    """Plain-JAX reference following the exact same dtype path as the kernel."""
    h = jnp.dot(x.astype(w1.dtype), w1, preferred_element_type=jnp.float32)
    h = jnp.maximum(h + b1, 0.0)
    o = jnp.dot(h.astype(w2.dtype), w2, preferred_element_type=jnp.float32)
    return o + b2


def init_params(key, obs_size, hidden_size, n_actions, param_dtype=jnp.bfloat16):
    # Deterministic init mimicking PyTorch Linear defaults:
    # U(-1/sqrt(fan_in), +1/sqrt(fan_in)). Weights cast to bf16 for the MXU,
    # biases kept in f32 (bias add / ReLU run in f32 on the VPU).
    k1, k2, k3, k4 = jax.random.split(key, 4)
    lim1 = 1.0 / jnp.sqrt(obs_size)
    lim2 = 1.0 / jnp.sqrt(hidden_size)
    w1 = jax.random.uniform(k1, (obs_size, hidden_size), jnp.float32,
                            -lim1, lim1).astype(param_dtype)
    b1 = jax.random.uniform(k2, (1, hidden_size), jnp.float32, -lim1, lim1)
    w2 = jax.random.uniform(k3, (hidden_size, n_actions), jnp.float32,
                            -lim2, lim2).astype(param_dtype)
    b2 = jax.random.uniform(k4, (1, n_actions), jnp.float32, -lim2, lim2)
    return w1, b1, w2, b2


if __name__ == "__main__":
    # CartPole-v0: obs_size=4, n_actions=2; hidden_size=128 as in the CEM script.
    # Large batch per call (the CEM driver should stack many observations) so
    # the kernel is not launch/step-overhead bound.
    B, OBS, HIDDEN, ACTIONS = 1024, 4, 128, 2

    key = jax.random.PRNGKey(0)
    kx, kp = jax.random.split(key)
    x = jax.random.normal(kx, (B, OBS), dtype=jnp.float32)
    w1, b1, w2, b2 = init_params(kp, OBS, HIDDEN, ACTIONS)

    out = net_forward(x, w1, b1, w2, b2, block_b=256)
    out = jax.block_until_ready(out)

    ref = net_reference(x, w1, b1, w2, b2)
    assert out.shape == (B, ACTIONS), out.shape
    assert jnp.allclose(out, ref, atol=1e-3, rtol=1e-3), float(
        jnp.max(jnp.abs(out - ref)))

    print("KERNEL_OK")
</pallas_src>

<mosaic_0001>
module attributes {stable_mosaic.version = 11 : i64} {
  func.func @mlp_kernel(%arg0: i32, %arg1: memref<256x4xf32, #tpu.memory_space<vmem>>, %arg2: memref<4x128xbf16, #tpu.memory_space<vmem>>, %arg3: memref<1x128xf32, #tpu.memory_space<vmem>>, %arg4: memref<128x128xbf16, #tpu.memory_space<vmem>>, %arg5: memref<1x128xf32, #tpu.memory_space<vmem>>, %arg6: memref<256x128xf32, #tpu.memory_space<vmem>>) attributes {dimension_semantics = [#tpu.dimension_semantics<parallel>], iteration_bounds = array<i64: 4>, scalar_prefetch = 0 : i64, scratch_operands = 0 : i64, tpu.core_type = #tpu.core_type<tc>, window_params = [{transform_indices = @transform_0, window_bounds = array<i64: 256, 4>}, {pipeline_mode = #tpu.pipeline_mode<synchronous>, transform_indices = @transform_1, window_bounds = array<i64: 4, 128>}, {pipeline_mode = #tpu.pipeline_mode<synchronous>, transform_indices = @transform_2, window_bounds = array<i64: 1, 128>}, {pipeline_mode = #tpu.pipeline_mode<synchronous>, transform_indices = @transform_3, window_bounds = array<i64: 128, 128>}, {pipeline_mode = #tpu.pipeline_mode<synchronous>, transform_indices = @transform_4, window_bounds = array<i64: 1, 128>}, {transform_indices = @transform_5, window_bounds = array<i64: 256, 128>}]} {
    %c0 = arith.constant 0 : index
    %c0_0 = arith.constant 0 : index
    %0 = vector.load %arg1[%c0, %c0_0] : memref<256x4xf32, #tpu.memory_space<vmem>>, vector<256x4xf32>
    %1 = arith.truncf %0 : vector<256x4xf32> to vector<256x4xbf16>
    %c0_1 = arith.constant 0 : index
    %c0_2 = arith.constant 0 : index
    %2 = vector.load %arg2[%c0_1, %c0_2] : memref<4x128xbf16, #tpu.memory_space<vmem>>, vector<4x128xbf16>
    %cst = arith.constant dense<0.000000e+00> : vector<256x128xf32>
    %3 = tpu.matmul %1, %2, %cst {dimension_numbers = #tpu.dot_dimension_numbers<[1], [0], [0], [1], [0, 0, 1, 1], [], []>} : vector<256x4xbf16>, vector<4x128xbf16>, vector<256x128xf32> -> vector<256x128xf32>
    %c0_3 = arith.constant 0 : index
    %c0_4 = arith.constant 0 : index
    %4 = vector.load %arg3[%c0_3, %c0_4] : memref<1x128xf32, #tpu.memory_space<vmem>>, vector<1x128xf32>
    %5 = vector.broadcast %4 : vector<1x128xf32> to vector<256x128xf32>
    %6 = arith.addf %3, %5 : vector<256x128xf32>
    %cst_5 = arith.constant 0.000000e+00 : f32
    %7 = vector.broadcast %cst_5 : f32 to vector<256x128xf32>
    %8 = arith.maximumf %6, %7 : vector<256x128xf32>
    %9 = arith.truncf %8 : vector<256x128xf32> to vector<256x128xbf16>
    %c0_6 = arith.constant 0 : index
    %c0_7 = arith.constant 0 : index
    %10 = vector.load %arg4[%c0_6, %c0_7] : memref<128x128xbf16, #tpu.memory_space<vmem>>, vector<128x128xbf16>
    %cst_8 = arith.constant dense<0.000000e+00> : vector<256x128xf32>
    %11 = tpu.matmul %9, %10, %cst_8 {dimension_numbers = #tpu.dot_dimension_numbers<[1], [0], [0], [1], [0, 0, 1, 1], [], []>} : vector<256x128xbf16>, vector<128x128xbf16>, vector<256x128xf32> -> vector<256x128xf32>
    %c0_9 = arith.constant 0 : index
    %c0_10 = arith.constant 0 : index
    %12 = vector.load %arg5[%c0_9, %c0_10] : memref<1x128xf32, #tpu.memory_space<vmem>>, vector<1x128xf32>
    %13 = vector.broadcast %12 : vector<1x128xf32> to vector<256x128xf32>
    %14 = arith.addf %11, %13 : vector<256x128xf32>
    %c0_11 = arith.constant 0 : index
    %c0_12 = arith.constant 0 : index
    %15 = vector.load %arg6[%c0_11, %c0_12] : memref<256x128xf32, #tpu.memory_space<vmem>>, vector<256x128xf32>
    tpu.vector_store %arg6[%c0_11, %c0_12], %14 {strides = array<i32>} : memref<256x128xf32, #tpu.memory_space<vmem>>, vector<256x128xf32>,
    return
  }
  func.func @transform_0(%arg0: i32) -> (i32, i32) {
    %c0_i32 = arith.constant 0 : i32
    %c0_i32_0 = arith.constant 0 : i32
    return %arg0, %c0_i32 : i32, i32
  }
  func.func @transform_1(%arg0: i32) -> (i32, i32) {
    %c0_i32 = arith.constant 0 : i32
    %c0_i32_0 = arith.constant 0 : i32
    %c0_i32_1 = arith.constant 0 : i32
    return %c0_i32, %c0_i32_0 : i32, i32
  }
  func.func @transform_2(%arg0: i32) -> (i32, i32) {
    %c0_i32 = arith.constant 0 : i32
    %c0_i32_0 = arith.constant 0 : i32
    %c0_i32_1 = arith.constant 0 : i32
    return %c0_i32, %c0_i32_0 : i32, i32
  }
  func.func @transform_3(%arg0: i32) -> (i32, i32) {
    %c0_i32 = arith.constant 0 : i32
    %c0_i32_0 = arith.constant 0 : i32
    %c0_i32_1 = arith.constant 0 : i32
    return %c0_i32, %c0_i32_0 : i32, i32
  }
  func.func @transform_4(%arg0: i32) -> (i32, i32) {
    %c0_i32 = arith.constant 0 : i32
    %c0_i32_0 = arith.constant 0 : i32
    %c0_i32_1 = arith.constant 0 : i32
    return %c0_i32, %c0_i32_0 : i32, i32
  }
  func.func @transform_5(%arg0: i32) -> (i32, i32) {
    %c0_i32 = arith.constant 0 : i32
    %c0_i32_0 = arith.constant 0 : i32
    return %arg0, %c0_i32 : i32, i32
  }
}

</mosaic_0001>

<llo_original>
// kernel: net_forward.1
$region0: #{net_forward.1}
  #allocation0 [shape = 'u32[]', space=smem, size = 0x4, offset = 0x4, fixed_abs, tag = 'smem constant byte address 0x4 - core index']
  #allocation1 [shape = 'u32[72,128]{1,0:T(1,128)}', space=vmem, size = 0x9000, scoped, tag = 'internal scratch']
  %s0 = inlined_call_operand.vmem [shape: f32[1024,4], index: 0, kind: input, shape index: {}]
  %s1 = inlined_call_operand.vmem [shape: bf16[4,128], index: 1, kind: input, shape index: {}]
  %s2 = inlined_call_operand.vmem [shape: f32[1,128], index: 2, kind: input, shape index: {}]
  %s3 = inlined_call_operand.vmem [shape: bf16[128,128], index: 3, kind: input, shape index: {}]
  %s4 = inlined_call_operand.vmem [shape: f32[1,128], index: 4, kind: input, shape index: {}]
  %s5 = inlined_call_operand.vmem [shape: f32[1024,128], index: 5, kind: output, shape index: {}]
  %s6 = sld [smem:[#allocation0]]
  $region53: #{net_forward.1} parent=0
    _
  %s8 = ssub.s32 1, %s6
  %s9 = scalar_select 0, %s8, %s6
  loop: start=0, step=1, limit=6
  $region2: #{net_forward.1} parent=0 // loop_pre_header
    _
  $region3: #{net_forward.1} parent=0 // loop_header
    %s11 = sphi 0, %s15
    %p12 = scmp.ge.s32.totalorder %s11, 6
    %s21 = sphi 0, %s23
    %s24 = sphi 0, %s21
    %s25 = sphi 0, %s24
    %s41 = sphi 0, %s25
    %s45 = sphi 0, %s45
    %s47 = sphi 0, %s45
    %s48 = sphi 0, %s47
    %s62 = sphi 0, %s48
    %s66 = sphi 0, %s66
    %s68 = sphi 0, %s66
    %s69 = sphi 0, %s68
    %s83 = sphi 0, %s69
    %s87 = sphi 0, %s87
    %s89 = sphi 0, %s87
    %s90 = sphi 0, %s89
    %s104 = sphi 0, %s90
    %s108 = sphi 0, %s108
    %s110 = sphi 0, %s108
    %s111 = sphi 0, %s110
    %s125 = sphi 0, %s111
    %s131 = sphi 0, %s133
    %s134 = sphi 0, %s131
    %s135 = sphi 0, %s134
    %s151 = sphi 0, %s135
  $region4: #{net_forward.1} parent=0 // loop_header_branch
    %14 = sbr.rel (%p12) target = $region8
  $region5: #{net_forward.1} parent=0 // loop_body
    %s16 = ssub.s32 %s11, 1
    %s17 = ssub.s32 %s11, 2
    %s18 = sadd.s32 %s11, 1
    %s19 = ssub.s32 %s11, %s18
    %p20 = scmp.eq.s32.totalorder %s19, 0
    %s22 = sadd.s32 %s21, 1
    %s23 = scalar_select %p20, %s21, %s22
    %p26 = pneg %p20
    %p27 = scmp.eq.s32.totalorder %s11, 3
    %p28 = por %p26, %p27
    %p29 = scmp.ne.s32.totalorder %s21, %s24
    %p30 = scmp.eq.s32.totalorder %s11, 0
    %p31 = por %p29, %p30
    %p32 = scmp.ne.s32.totalorder %s21, %s24
    %p33 = scmp.eq.s32.totalorder %s16, 3
    %p34 = por %p32, %p33
    %p35 = scmp.ne.s32.totalorder %s24, %s25
    %p36 = scmp.eq.s32.totalorder %s16, 0
    %p37 = por %p35, %p36
    %p38 = scmp.ne.s32.totalorder %s24, %s25
    %p39 = scmp.eq.s32.totalorder %s17, 3
    %p40 = por %p38, %p39
    %p42 = scmp.ne.s32.totalorder %s25, %s41
    %p43 = scmp.eq.s32.totalorder %s17, 0
    %p44 = por %p42, %p43
    %s46 = sadd.s32 %s45, 1
    %p49 = scmp.eq.s32.totalorder %s11, 3
    %p50 = scmp.ne.s32.totalorder %s45, %s47
    %p51 = scmp.eq.s32.totalorder %s11, 0
    %p52 = por %p50, %p51
    %p53 = scmp.ne.s32.totalorder %s45, %s47
    %p54 = scmp.eq.s32.totalorder %s16, 3
    %p55 = por %p53, %p54
    %p56 = scmp.ne.s32.totalorder %s47, %s48
    %p57 = scmp.eq.s32.totalorder %s16, 0
    %p58 = por %p56, %p57
    %p59 = scmp.ne.s32.totalorder %s47, %s48
    %p60 = scmp.eq.s32.totalorder %s17, 3
    %p61 = por %p59, %p60
    %p63 = scmp.ne.s32.totalorder %s48, %s62
    %p64 = scmp.eq.s32.totalorder %s17, 0
    %p65 = por %p63, %p64
    %s67 = sadd.s32 %s66, 1
    %p70 = scmp.eq.s32.totalorder %s11, 3
    %p71 = scmp.ne.s32.totalorder %s66, %s68
    %p72 = scmp.eq.s32.totalorder %s11, 0
    %p73 = por %p71, %p72
    %p74 = scmp.ne.s32.totalorder %s66, %s68
    %p75 = scmp.eq.s32.totalorder %s16, 3
    %p76 = por %p74, %p75
    %p77 = scmp.ne.s32.totalorder %s68, %s69
    %p78 = scmp.eq.s32.totalorder %s16, 0
    %p79 = por %p77, %p78
    %p80 = scmp.ne.s32.totalorder %s68, %s69
    %p81 = scmp.eq.s32.totalorder %s17, 3
    %p82 = por %p80, %p81
    %p84 = scmp.ne.s32.totalorder %s69, %s83
    %p85 = scmp.eq.s32.totalorder %s17, 0
    %p86 = por %p84, %p85
    %s88 = sadd.s32 %s87, 1
    %p91 = scmp.eq.s32.totalorder %s11, 3
    %p92 = scmp.ne.s32.totalorder %s87, %s89
    %p93 = scmp.eq.s32.totalorder %s11, 0
    %p94 = por %p92, %p93
    %p95 = scmp.ne.s32.totalorder %s87, %s89
    %p96 = scmp.eq.s32.totalorder %s16, 3
    %p97 = por %p95, %p96
    %p98 = scmp.ne.s32.totalorder %s89, %s90
    %p99 = scmp.eq.s32.totalorder %s16, 0
    %p100 = por %p98, %p99
    %p101 = scmp.ne.s32.totalorder %s89, %s90
    %p102 = scmp.eq.s32.totalorder %s17, 3
    %p103 = por %p101, %p102
    %p105 = scmp.ne.s32.totalorder %s90, %s104
    %p106 = scmp.eq.s32.totalorder %s17, 0
    %p107 = por %p105, %p106
    %s109 = sadd.s32 %s108, 1
    %p112 = scmp.eq.s32.totalorder %s11, 3
    %p113 = scmp.ne.s32.totalorder %s108, %s110
    %p114 = scmp.eq.s32.totalorder %s11, 0
    %p115 = por %p113, %p114
    %p116 = scmp.ne.s32.totalorder %s108, %s110
    %p117 = scmp.eq.s32.totalorder %s16, 3
    %p118 = por %p116, %p117
    %p119 = scmp.ne.s32.totalorder %s110, %s111
    %p120 = scmp.eq.s32.totalorder %s16, 0
    %p121 = por %p119, %p120
    %p122 = scmp.ne.s32.totalorder %s110, %s111
    %p123 = scmp.eq.s32.totalorder %s17, 3
    %p124 = por %p122, %p123
    %p126 = scmp.ne.s32.totalorder %s111, %s125
    %p127 = scmp.eq.s32.totalorder %s17, 0
    %p128 = por %p126, %p127
    %s129 = ssub.s32 %s11, %s18
    %p130 = scmp.eq.s32.totalorder %s129, 0
    %s132 = sadd.s32 %s131, 1
    %s133 = scalar_select %p130, %s131, %s132
    %p136 = pneg %p130
    %p137 = scmp.eq.s32.totalorder %s11, 3
    %p138 = por %p136, %p137
    %p139 = scmp.ne.s32.totalorder %s131, %s134
    %p140 = scmp.eq.s32.totalorder %s11, 0
    %p141 = por %p139, %p140
    %p142 = scmp.ne.s32.totalorder %s131, %s134
    %p143 = scmp.eq.s32.totalorder %s16, 3
    %p144 = por %p142, %p143
    %p145 = scmp.ne.s32.totalorder %s134, %s135
    %p146 = scmp.eq.s32.totalorder %s16, 0
    %p147 = por %p145, %p146
    %p148 = scmp.ne.s32.totalorder %s134, %s135
    %p149 = scmp.eq.s32.totalorder %s17, 3
    %p150 = por %p148, %p149
    %p152 = scmp.ne.s32.totalorder %s135, %s151
    %p153 = scmp.eq.s32.totalorder %s17, 0
    %p154 = por %p152, %p153
    %p155 = scmp.le.s32.totalorder 1, %s11
    %p156 = scmp.lt.s32.totalorder %s11, 5
    %p157 = pnand %p155, %p156
    %p158 = pneg %p157
    // Predicated region
    $region9: #{net_forward.1} parent=5 // pred_check
      _
    $region10: #{net_forward.1} parent=5 // pred_check_branch
      %160 = sbr.rel (%p157) target = $region12
    $region11: #{net_forward.1} parent=5 // pred_region
      %s161 = ssub.s32 %s11, 1
      // Predicated region
      $region13: #{net_forward.1} parent=11 // pred_check
        %p162 = pneg %p58
      $region14: #{net_forward.1} parent=11 // pred_check_branch
        %164 = sbr.rel (%p162) target = $region16
      $region15: #{net_forward.1} parent=11 // pred_region
        _
      $region16: #{net_forward.1} parent=11 // pred_fallthru
        _
      // Predicated region
      $region17: #{net_forward.1} parent=11 // pred_check
        %p165 = pneg %p79
      $region18: #{net_forward.1} parent=11 // pred_check_branch
        %167 = sbr.rel (%p165) target = $region20
      $region19: #{net_forward.1} parent=11 // pred_region
        _
      $region20: #{net_forward.1} parent=11 // pred_fallthru
        _
      // Predicated region
      $region21: #{net_forward.1} parent=11 // pred_check
        %p168 = pneg %p100
      $region22: #{net_forward.1} parent=11 // pred_check_branch
        %170 = sbr.rel (%p168) target = $region24
      $region23: #{net_forward.1} parent=11 // pred_region
        _
      $region24: #{net_forward.1} parent=11 // pred_fallthru
        _
      // Predicated region
      $region25: #{net_forward.1} parent=11 // pred_check
        %p171 = pneg %p121
      $region26: #{net_forward.1} parent=11 // pred_check_branch
        %173 = sbr.rel (%p171) target = $region28
      $region27: #{net_forward.1} parent=11 // pred_region
        _
      $region28: #{net_forward.1} parent=11 // pred_fallthru
        _
    $region12: #{net_forward.1} parent=5 // pred_fallthru
      _
    %p174 = scmp.lt.s32.totalorder %s11, 4
    // Predicated region
    $region29: #{net_forward.1} parent=5 // pred_check
      %p175 = pneg %p174
    $region30: #{net_forward.1} parent=5 // pred_check_branch
      %177 = sbr.rel (%p175) target = $region32
    $region31: #{net_forward.1} parent=5 // pred_region
      // Predicated region
      $region33: #{net_forward.1} parent=31 // pred_check
        %p178 = pneg %p31
      $region34: #{net_forward.1} parent=31 // pred_check_branch
        %180 = sbr.rel (%p178) target = $region36
      $region35: #{net_forward.1} parent=31 // pred_region
        %s181 = smul.u32 32, %s11
        %p182 = scmp.lt.s32.totalorder %s181, 127
        %s183 = scalar_select %p182, %s181, 127
        %s184 = smul.addr %s183, 8
        %s185 = scalar_lea.vmem %s0, %s184
        %s186 = smul.u32 32, %s11
      $region36: #{net_forward.1} parent=31 // pred_fallthru
        _
    $region32: #{net_forward.1} parent=5 // pred_fallthru
      _
    %p187 = scmp.le.s32.totalorder 1, %s11
    %p188 = scmp.lt.s32.totalorder %s11, 5
    %p189 = pnand %p187, %p188
    %p190 = pneg %p189
    // Predicated region
    $region37: #{net_forward.1} parent=5 // pred_check
      _
    $region38: #{net_forward.1} parent=5 // pred_check_branch
      %192 = sbr.rel (%p189) target = $region40
    $region39: #{net_forward.1} parent=5 // pred_region
      %s193 = ssub.s32 %s11, 1
      %s194 = smul.u32 32, %s16
      %p195 = scmp.lt.s32.totalorder %s194, 127
      %s196 = scalar_select %p195, %s194, 127
      %s197 = smul.addr %s196, 8
      %s198 = scalar_lea.vmem %s0, %s197
      %p199 = pneg %p37
      %p200 = pneg %p34
      %p201 = pneg %p58
      %p202 = pneg %p55
      %p203 = pneg %p79
      %p204 = pneg %p76
      %p205 = pneg %p100
      %p206 = pneg %p97
      %p207 = pneg %p121
      %p208 = pneg %p118
      %p209 = pneg %p147
      %p210 = pneg %p144
      %s211 = smul.u32 32, %s16
      %p212 = scmp.lt.s32.totalorder %s211, 127
      %s213 = scalar_select %p212, %s211, 127
      %s214 = smul.addr %s213, 8
      %s215 = scalar_lea.vmem %s5, %s214
      %s216 = smul.u32 32, %s16
      %p217 = scmp.lt.s32.totalorder %s216, 127
      %s218 = scalar_select %p217, %s216, 127
      %s219 = smul.addr %s218, 8
      %s220 = scalar_lea.vmem %s0, %s219
      %s221 = smul.u32 32, %s16
      %s222 = smul.u32 32, %s16
      %p223 = scmp.lt.s32.totalorder %s222, 127
      %s224 = scalar_select %p223, %s222, 127
      %s225 = smul.addr %s224, 8
      %s226 = scalar_lea.vmem %s5, %s225
      %s227 = smul.u32 32, %s16
      %v229 = vld [vmem:[%s220] sm:$0xff]
      %v230 = vld [vmem:[%s220 + $0x8] sm:$0xff]
      %v231 = vld [vmem:[%s220 + $0x10] sm:$0xff]
      %v232 = vld [vmem:[%s220 + $0x18] sm:$0xff]
      %v233 = vld [vmem:[%s220 + $0x20] sm:$0xff]
      %v234 = vld [vmem:[%s220 + $0x28] sm:$0xff]
      %v235 = vld [vmem:[%s220 + $0x30] sm:$0xff]
      %v236 = vld [vmem:[%s220 + $0x38] sm:$0xff]
      %v237 = vld [vmem:[%s220 + $0x40] sm:$0xff]
      %v238 = vld [vmem:[%s220 + $0x48] sm:$0xff]
      %v239 = vld [vmem:[%s220 + $0x50] sm:$0xff]
      %v240 = vld [vmem:[%s220 + $0x58] sm:$0xff]
      %v241 = vld [vmem:[%s220 + $0x60] sm:$0xff]
      %v242 = vld [vmem:[%s220 + $0x68] sm:$0xff]
      %v243 = vld [vmem:[%s220 + $0x70] sm:$0xff]
      %v244 = vld [vmem:[%s220 + $0x78] sm:$0xff]
      %v245 = vld [vmem:[%s220 + $0x80] sm:$0xff]
      %v246 = vld [vmem:[%s220 + $0x88] sm:$0xff]
      %v247 = vld [vmem:[%s220 + $0x90] sm:$0xff]
      %v248 = vld [vmem:[%s220 + $0x98] sm:$0xff]
      %v249 = vld [vmem:[%s220 + $0xa0] sm:$0xff]
      %v250 = vld [vmem:[%s220 + $0xa8] sm:$0xff]
      %v251 = vld [vmem:[%s220 + $0xb0] sm:$0xff]
      %v252 = vld [vmem:[%s220 + $0xb8] sm:$0xff]
      %v253 = vld [vmem:[%s220 + $0xc0] sm:$0xff]
      %v254 = vld [vmem:[%s220 + $0xc8] sm:$0xff]
      %v255 = vld [vmem:[%s220 + $0xd0] sm:$0xff]
      %v256 = vld [vmem:[%s220 + $0xd8] sm:$0xff]
      %v257 = vld [vmem:[%s220 + $0xe0] sm:$0xff]
      %v258 = vld [vmem:[%s220 + $0xe8] sm:$0xff]
      %v259 = vld [vmem:[%s220 + $0xf0] sm:$0xff]
      %v260 = vld [vmem:[%s220 + $0xf8] sm:$0xff]
      %v261 = vpack.c.bf16 %v230, %v229
      %v262 = vpack.c.bf16 %v232, %v231
      %v263 = vpack.c.bf16 %v234, %v233
      %v264 = vpack.c.bf16 %v236, %v235
      %v265 = vpack.c.bf16 %v238, %v237
      %v266 = vpack.c.bf16 %v240, %v239
      %v267 = vpack.c.bf16 %v242, %v241
      %v268 = vpack.c.bf16 %v244, %v243
      %v269 = vpack.c.bf16 %v246, %v245
      %v270 = vpack.c.bf16 %v248, %v247
      %v271 = vpack.c.bf16 %v250, %v249
      %v272 = vpack.c.bf16 %v252, %v251
      %v273 = vpack.c.bf16 %v254, %v253
      %v274 = vpack.c.bf16 %v256, %v255
      %v275 = vpack.c.bf16 %v258, %v257
      %v276 = vpack.c.bf16 %v260, %v259
      %v277 = vld [vmem:[%s1] sm:$0x3]
      %v278 = vld [vmem:[%s2] sm:$0x1]
      %v280 = vperm.slane %v278, 0
      %vm282 = vcmask 31744
      %v284 = vsel %vm282, %v261, 0
      %v287 = vsel %vm282, %v262, 0
      %v290 = vsel %vm282, %v263, 0
      %v293 = vsel %vm282, %v264, 0
      %v296 = vsel %vm282, %v265, 0
      %v299 = vsel %vm282, %v266, 0
      %v302 = vsel %vm282, %v267, 0
      %v305 = vsel %vm282, %v268, 0
      %v308 = vsel %vm282, %v269, 0
      %v311 = vsel %vm282, %v270, 0
      %v314 = vsel %vm282, %v271, 0
      %v317 = vsel %vm282, %v272, 0
      %v320 = vsel %vm282, %v273, 0
      %v323 = vsel %vm282, %v274, 0
      %v326 = vsel %vm282, %v275, 0
      %v329 = vsel %vm282, %v276, 0
      %vm331 = vcmask 1041408
      %v333 = vsel %vm331, %v277, 0
      %335 = vmatpush.bf16.msra.mxu0 0
      %336 = vmatpush.bf16.msra.mxu0 0
      %337 = vmatpush.bf16.msra.mxu0 0
      %338 = vmatpush.bf16.msra.mxu0 0
      %339 = vmatpush.bf16.msra.mxu0 0
      %340 = vmatpush.bf16.msra.mxu0 0
      %341 = vmatpush.bf16.msra.mxu0 0
      %342 = vmatpush.bf16.msra.mxu0 %v333
      %343 = vmatmul.bf16.gmra.mxu0 %v284
      %v344 = vpop.f32.mrf.mxu0
      %v345 = vadd.f32 %v280, %v344
      %v346 = vpop.f32.mrf.mxu0
      %v347 = vadd.f32 %v280, %v346
      %348 = vmatmul.bf16.gmra.mxu0 %v287
      %v349 = vpop.f32.mrf.mxu0
      %v350 = vadd.f32 %v280, %v349
      %v351 = vpop.f32.mrf.mxu0
      %v352 = vadd.f32 %v280, %v351
      %353 = vmatmul.bf16.gmra.mxu0 %v290
      %v354 = vpop.f32.mrf.mxu0
      %v355 = vadd.f32 %v280, %v354
      %v356 = vpop.f32.mrf.mxu0
      %v357 = vadd.f32 %v280, %v356
      %358 = vmatmul.bf16.gmra.mxu0 %v293
      %v359 = vpop.f32.mrf.mxu0
      %v360 = vadd.f32 %v280, %v359
      %v361 = vpop.f32.mrf.mxu0
      %v362 = vadd.f32 %v280, %v361
      %363 = vmatmul.bf16.gmra.mxu0 %v296
      %v364 = vpop.f32.mrf.mxu0
      %v365 = vadd.f32 %v280, %v364
      %v366 = vpop.f32.mrf.mxu0
      %v367 = vadd.f32 %v280, %v366
      %368 = vmatmul.bf16.gmra.mxu0 %v299
      %v369 = vpop.f32.mrf.mxu0
      %v370 = vadd.f32 %v280, %v369
      %v371 = vpop.f32.mrf.mxu0
      %v372 = vadd.f32 %v280, %v371
      %373 = vmatmul.bf16.gmra.mxu0 %v302
      %v374 = vpop.f32.mrf.mxu0
      %v375 = vadd.f32 %v280, %v374
      %v376 = vpop.f32.mrf.mxu0
      %v377 = vadd.f32 %v280, %v376
      %378 = vmatmul.bf16.gmra.mxu0 %v305
      %v379 = vpop.f32.mrf.mxu0
      %v380 = vadd.f32 %v280, %v379
      %v381 = vpop.f32.mrf.mxu0
      %v382 = vadd.f32 %v280, %v381
      %383 = vmatmul.bf16.gmra.mxu0 %v308
      %v384 = vpop.f32.mrf.mxu0
      %v385 = vadd.f32 %v280, %v384
      %v386 = vpop.f32.mrf.mxu0
      %v387 = vadd.f32 %v280, %v386
      %388 = vmatmul.bf16.gmra.mxu0 %v311
      %v389 = vpop.f32.mrf.mxu0
      %v390 = vadd.f32 %v280, %v389
      %v391 = vpop.f32.mrf.mxu0
      %v392 = vadd.f32 %v280, %v391
      %393 = vmatmul.bf16.gmra.mxu0 %v314
      %v394 = vpop.f32.mrf.mxu0
      %v395 = vadd.f32 %v280, %v394
      %v396 = vpop.f32.mrf.mxu0
      %v397 = vadd.f32 %v280, %v396
      %398 = vmatmul.bf16.gmra.mxu0 %v317
      %v399 = vpop.f32.mrf.mxu0
      %v400 = vadd.f32 %v280, %v399
      %v401 = vpop.f32.mrf.mxu0
      %v402 = vadd.f32 %v280, %v401
      %403 = vmatmul.bf16.gmra.mxu0 %v320
      %v404 = vpop.f32.mrf.mxu0
      %v405 = vadd.f32 %v280, %v404
      %v406 = vpop.f32.mrf.mxu0
      %v407 = vadd.f32 %v280, %v406
      %408 = vmatmul.bf16.gmra.mxu0 %v323
      %v409 = vpop.f32.mrf.mxu0
      %v410 = vadd.f32 %v280, %v409
      %v411 = vpop.f32.mrf.mxu0
      %v412 = vadd.f32 %v280, %v411
      %413 = vmatmul.bf16.gmra.mxu0 %v326
      %v414 = vpop.f32.mrf.mxu0
      %v415 = vadd.f32 %v280, %v414
      %v416 = vpop.f32.mrf.mxu0
      %v417 = vadd.f32 %v280, %v416
      %418 = vmatmul.bf16.gmra.mxu0 %v329
      %v419 = vpop.f32.mrf.mxu0
      %v420 = vadd.f32 %v280, %v419
      %v421 = vpop.f32.mrf.mxu0
      %v422 = vadd.f32 %v280, %v421
      %423 = vdwg.mxu0
      %v424 = vmax.f32 %v345, 0.0
      %v425 = vmax.f32 %v347, 0.0
      %v426 = vmax.f32 %v350, 0.0
      %v427 = vmax.f32 %v352, 0.0
      %v428 = vmax.f32 %v355, 0.0
      %v429 = vmax.f32 %v357, 0.0
      %v430 = vmax.f32 %v360, 0.0
      %v431 = vmax.f32 %v362, 0.0
      %v432 = vmax.f32 %v365, 0.0
      %v433 = vmax.f32 %v367, 0.0
      %v434 = vmax.f32 %v370, 0.0
      %v435 = vmax.f32 %v372, 0.0
      %v436 = vmax.f32 %v375, 0.0
      %v437 = vmax.f32 %v377, 0.0
      %v438 = vmax.f32 %v380, 0.0
      %v439 = vmax.f32 %v382, 0.0
      %v440 = vmax.f32 %v385, 0.0
      %v441 = vmax.f32 %v387, 0.0
      %v442 = vmax.f32 %v390, 0.0
      %v443 = vmax.f32 %v392, 0.0
      %v444 = vmax.f32 %v395, 0.0
      %v445 = vmax.f32 %v397, 0.0
      %v446 = vmax.f32 %v400, 0.0
      %v447 = vmax.f32 %v402, 0.0
      %v448 = vmax.f32 %v405, 0.0
      %v449 = vmax.f32 %v407, 0.0
      %v450 = vmax.f32 %v410, 0.0
      %v451 = vmax.f32 %v412, 0.0
      %v452 = vmax.f32 %v415, 0.0
      %v453 = vmax.f32 %v417, 0.0
      %v454 = vmax.f32 %v420, 0.0
      %v455 = vmax.f32 %v422, 0.0
      %v456 = vpack.c.bf16 %v425, %v424
      %v457 = vpack.c.bf16 %v427, %v426
      %v458 = vpack.c.bf16 %v429, %v428
      %v459 = vpack.c.bf16 %v431, %v430
      %v460 = vpack.c.bf16 %v433, %v432
      %v461 = vpack.c.bf16 %v435, %v434
      %v462 = vpack.c.bf16 %v437, %v436
      %v463 = vpack.c.bf16 %v439, %v438
      %v464 = vpack.c.bf16 %v441, %v440
      %v465 = vpack.c.bf16 %v443, %v442
      %v466 = vpack.c.bf16 %v445, %v444
      %v467 = vpack.c.bf16 %v447, %v446
      %v468 = vpack.c.bf16 %v449, %v448
      %v469 = vpack.c.bf16 %v451, %v450
      %v470 = vpack.c.bf16 %v453, %v452
      %v471 = vpack.c.bf16 %v455, %v454
      %v472 = vld [vmem:[%s3] sm:$0xf]
      %v473 = vld [vmem:[%s3 + $0x4] sm:$0xf]
      %v474 = vld [vmem:[%s3 + $0x8] sm:$0xf]
      %v475 = vld [vmem:[%s3 + $0xc] sm:$0xf]
      %v476 = vld [vmem:[%s3 + $0x10] sm:$0xf]
      %v477 = vld [vmem:[%s3 + $0x14] sm:$0xf]
      %v478 = vld [vmem:[%s3 + $0x18] sm:$0xf]
      %v479 = vld [vmem:[%s3 + $0x1c] sm:$0xf]
      %v480 = vld [vmem:[%s3 + $0x20] sm:$0xf]
      %v481 = vld [vmem:[%s3 + $0x24] sm:$0xf]
      %v482 = vld [vmem:[%s3 + $0x28] sm:$0xf]
      %v483 = vld [vmem:[%s3 + $0x2c] sm:$0xf]
      %v484 = vld [vmem:[%s3 + $0x30] sm:$0xf]
      %v485 = vld [vmem:[%s3 + $0x34] sm:$0xf]
      %v486 = vld [vmem:[%s3 + $0x38] sm:$0xf]
      %v487 = vld [vmem:[%s3 + $0x3c] sm:$0xf]
      %v488 = vld [vmem:[%s4] sm:$0x1]
      %v490 = vperm.slane %v488, 0
      %v508 = vunpack.c.l.b16 %v472
      %v509 = vunpack.c.l.b16 %v473
      %v510 = vunpack.c.l.b16 %v474
      %v511 = vunpack.c.l.b16 %v475
      %v512 = vunpack.c.l.b16 %v476
      %v513 = vunpack.c.l.b16 %v477
      %v514 = vunpack.c.l.b16 %v478
      %v515 = vunpack.c.l.b16 %v479
      %v516 = vunpack.c.l.b16 %v480
      %v517 = vunpack.c.l.b16 %v481
      %v518 = vunpack.c.l.b16 %v482
      %v519 = vunpack.c.l.b16 %v483
      %v520 = vunpack.c.l.b16 %v484
      %v521 = vunpack.c.l.b16 %v485
      %v522 = vunpack.c.l.b16 %v486
      %v523 = vunpack.c.l.b16 %v487
      %v524 = vpack.c.b16 %v509, %v508
      %v525 = vpack.c.b16 %v511, %v510
      %v526 = vpack.c.b16 %v513, %v512
      %v527 = vpack.c.b16 %v515, %v514
      %v528 = vpack.c.b16 %v517, %v516
      %v529 = vpack.c.b16 %v519, %v518
      %v530 = vpack.c.b16 %v521, %v520
      %v531 = vpack.c.b16 %v523, %v522
      %540 = vmatpush.bf16.msra.mxu0 %v531
      %541 = vmatpush.bf16.msra.mxu0 %v530
      %542 = vmatpush.bf16.msra.mxu0 %v529
      %543 = vmatpush.bf16.msra.mxu0 %v528
      %544 = vmatpush.bf16.msra.mxu0 %v527
      %545 = vmatpush.bf16.msra.mxu0 %v526
      %546 = vmatpush.bf16.msra.mxu0 %v525
      %547 = vmatpush.bf16.msra.mxu0 %v524
      %548 = vmatmul.bf16.gmra.mxu0 %v456
      %v549 = vpop.f32.mrf.mxu0
      %v550 = vadd.f32 %v490, %v549
      %v551 = vpop.f32.mrf.mxu0
      %v552 = vadd.f32 %v490, %v551
      %553 = vmatmul.bf16.gmra.mxu0 %v457
      %v554 = vpop.f32.mrf.mxu0
      %v555 = vadd.f32 %v490, %v554
      %v556 = vpop.f32.mrf.mxu0
      %v557 = vadd.f32 %v490, %v556
      %558 = vmatmul.bf16.gmra.mxu0 %v458
      %v559 = vpop.f32.mrf.mxu0
      %v560 = vadd.f32 %v490, %v559
      %v561 = vpop.f32.mrf.mxu0
      %v562 = vadd.f32 %v490, %v561
      %563 = vmatmul.bf16.gmra.mxu0 %v459
      %v564 = vpop.f32.mrf.mxu0
      %v565 = vadd.f32 %v490, %v564
      %v566 = vpop.f32.mrf.mxu0
      %v567 = vadd.f32 %v490, %v566
      %568 = vmatmul.bf16.gmra.mxu0 %v460
      %v569 = vpop.f32.mrf.mxu0
      %v570 = vadd.f32 %v490, %v569
      %v571 = vpop.f32.mrf.mxu0
      %v572 = vadd.f32 %v490, %v571
      %573 = vmatmul.bf16.gmra.mxu0 %v461
      %v574 = vpop.f32.mrf.mxu0
      %v575 = vadd.f32 %v490, %v574
      %v576 = vpop.f32.mrf.mxu0
      %v577 = vadd.f32 %v490, %v576
      %578 = vmatmul.bf16.gmra.mxu0 %v462
      %v579 = vpop.f32.mrf.mxu0
      %v580 = vadd.f32 %v490, %v579
      %v581 = vpop.f32.mrf.mxu0
      %v582 = vadd.f32 %v490, %v581
      %583 = vmatmul.bf16.gmra.mxu0 %v463
      %v584 = vpop.f32.mrf.mxu0
      %v585 = vadd.f32 %v490, %v584
      %v586 = vpop.f32.mrf.mxu0
      %v587 = vadd.f32 %v490, %v586
      %588 = vmatmul.bf16.gmra.mxu0 %v464
      %v589 = vpop.f32.mrf.mxu0
      %v590 = vadd.f32 %v490, %v589
      %v591 = vpop.f32.mrf.mxu0
      %v592 = vadd.f32 %v490, %v591
      %593 = vmatmul.bf16.gmra.mxu0 %v465
      %v594 = vpop.f32.mrf.mxu0
      %v595 = vadd.f32 %v490, %v594
      %v596 = vpop.f32.mrf.mxu0
      %v597 = vadd.f32 %v490, %v596
      %598 = vmatmul.bf16.gmra.mxu0 %v466
      %v599 = vpop.f32.mrf.mxu0
      %v600 = vadd.f32 %v490, %v599
      %v601 = vpop.f32.mrf.mxu0
      %v602 = vadd.f32 %v490, %v601
      %603 = vmatmul.bf16.gmra.mxu0 %v467
      %v604 = vpop.f32.mrf.mxu0
      %v605 = vadd.f32 %v490, %v604
      %v606 = vpop.f32.mrf.mxu0
      %v607 = vadd.f32 %v490, %v606
      %608 = vmatmul.bf16.gmra.mxu0 %v468
      %v609 = vpop.f32.mrf.mxu0
      %v610 = vadd.f32 %v490, %v609
      %v611 = vpop.f32.mrf.mxu0
      %v612 = vadd.f32 %v490, %v611
      %613 = vmatmul.bf16.gmra.mxu0 %v469
      %v614 = vpop.f32.mrf.mxu0
      %v615 = vadd.f32 %v490, %v614
      %v616 = vpop.f32.mrf.mxu0
      %v617 = vadd.f32 %v490, %v616
      %618 = vmatmul.bf16.gmra.mxu0 %v470
      %v619 = vpop.f32.mrf.mxu0
      %v620 = vadd.f32 %v490, %v619
      %v621 = vpop.f32.mrf.mxu0
      %v622 = vadd.f32 %v490, %v621
      %623 = vmatmul.bf16.gmra.mxu0 %v471
      %v624 = vpop.f32.mrf.mxu0
      %v625 = vadd.f32 %v490, %v624
      %v626 = vpop.f32.mrf.mxu0
      %v627 = vadd.f32 %v490, %v626
      %628 = vdwg.mxu0
      %629 = vst [vmem:[%s226] sm:$0xff] %v550
      %630 = vst [vmem:[%s226 + $0x8] sm:$0xff] %v552
      %631 = vst [vmem:[%s226 + $0x10] sm:$0xff] %v555
      %632 = vst [vmem:[%s226 + $0x18] sm:$0xff] %v557
      %633 = vst [vmem:[%s226 + $0x20] sm:$0xff] %v560
      %634 = vst [vmem:[%s226 + $0x28] sm:$0xff] %v562
      %635 = vst [vmem:[%s226 + $0x30] sm:$0xff] %v565
      %636 = vst [vmem:[%s226 + $0x38] sm:$0xff] %v567
      %637 = vst [vmem:[%s226 + $0x40] sm:$0xff] %v570
      %638 = vst [vmem:[%s226 + $0x48] sm:$0xff] %v572
      %639 = vst [vmem:[%s226 + $0x50] sm:$0xff] %v575
      %640 = vst [vmem:[%s226 + $0x58] sm:$0xff] %v577
      %641 = vst [vmem:[%s226 + $0x60] sm:$0xff] %v580
      %642 = vst [vmem:[%s226 + $0x68] sm:$0xff] %v582
      %643 = vst [vmem:[%s226 + $0x70] sm:$0xff] %v585
      %644 = vst [vmem:[%s226 + $0x78] sm:$0xff] %v587
      %645 = vst [vmem:[%s226 + $0x80] sm:$0xff] %v590
      %646 = vst [vmem:[%s226 + $0x88] sm:$0xff] %v592
      %647 = vst [vmem:[%s226 + $0x90] sm:$0xff] %v595
      %648 = vst [vmem:[%s226 + $0x98] sm:$0xff] %v597
      %649 = vst [vmem:[%s226 + $0xa0] sm:$0xff] %v600
      %650 = vst [vmem:[%s226 + $0xa8] sm:$0xff] %v602
      %651 = vst [vmem:[%s226 + $0xb0] sm:$0xff] %v605
      %652 = vst [vmem:[%s226 + $0xb8] sm:$0xff] %v607
      %653 = vst [vmem:[%s226 + $0xc0] sm:$0xff] %v610
      %654 = vst [vmem:[%s226 + $0xc8] sm:$0xff] %v612
      %655 = vst [vmem:[%s226 + $0xd0] sm:$0xff] %v615
      %656 = vst [vmem:[%s226 + $0xd8] sm:$0xff] %v617
      %657 = vst [vmem:[%s226 + $0xe0] sm:$0xff] %v620
      %658 = vst [vmem:[%s226 + $0xe8] sm:$0xff] %v622
      %659 = vst [vmem:[%s226 + $0xf0] sm:$0xff] %v625
      %660 = vst [vmem:[%s226 + $0xf8] sm:$0xff] %v627
      %s661 = smul.u32 32, %s16
      %p662 = scmp.lt.s32.totalorder %s661, 127
      %s663 = scalar_select %p662, %s661, 127
      %s664 = smul.addr %s663, 8
      %s665 = scalar_lea.vmem %s5, %s664
      // Predicated region
      $region41: #{net_forward.1} parent=39 // pred_check
        %p666 = pneg %p144
      $region42: #{net_forward.1} parent=39 // pred_check_branch
        %668 = sbr.rel (%p666) target = $region44
      $region43: #{net_forward.1} parent=39 // pred_region
        %s669 = smul.u32 32, %s16
      $region44: #{net_forward.1} parent=39 // pred_fallthru
        _
    $region40: #{net_forward.1} parent=5 // pred_fallthru
      _
    %p670 = scmp.le.s32.totalorder 2, %s11
    // Predicated region
    $region45: #{net_forward.1} parent=5 // pred_check
      %p671 = pneg %p670
    $region46: #{net_forward.1} parent=5 // pred_check_branch
      %673 = sbr.rel (%p671) target = $region48
    $region47: #{net_forward.1} parent=5 // pred_region
      %s674 = ssub.s32 %s11, 2
      // Predicated region
      $region49: #{net_forward.1} parent=47 // pred_check
        %p675 = pneg %p150
      $region50: #{net_forward.1} parent=47 // pred_check_branch
        %677 = sbr.rel (%p675) target = $region52
      $region51: #{net_forward.1} parent=47 // pred_region
        %s678 = smul.u32 32, %s17
        %p679 = scmp.lt.s32.totalorder %s678, 127
        %s680 = scalar_select %p679, %s678, 127
        %s681 = smul.addr %s680, 8
        %s682 = scalar_lea.vmem %s5, %s681
      $region52: #{net_forward.1} parent=47 // pred_fallthru
        _
    $region48: #{net_forward.1} parent=5 // pred_fallthru
      _
  $region6: #{net_forward.1} parent=0 // loop_footer
    %s15 = sadd.s32 1, %s11
  $region7: #{net_forward.1} parent=0 // loop_footer_branch
    %10 = sbr.rel target = $region3
  $region8: #{net_forward.1} parent=0 // loop_exit
    _

</llo_original>
